<compile_context>
chip_gen: v6e
topology: v6e:2x2x1
jax: 0.10.0
libtpu: 0.0.40
codegen_flags: <defaults>
</compile_context>

<pallas_src>
import functools

import jax
import jax.numpy as jnp
import numpy as np
from jax import lax
from jax.experimental import pallas as pl
from jax.experimental.pallas import tpu as pltpu


def _round_up(x, m):
    return (x + m - 1) // m * m


# --------------------------------------------------------------------------------------
# Kernels
# --------------------------------------------------------------------------------------
def _conv_stats_kernel(lhs_ref, w_ref, out_ref, stats_ref, acc_ref=None, *, single_k):
    """im2col matmul tile; emits bias-free conv output + per-tile channel sum / sum-of-squares.

    lhs_ref  : (tm, tk)   bf16 im2col rows
    w_ref    : (tk, Cp)   bf16 reshaped conv weights (VMEM-resident when single_k)
    out_ref  : (tm, Cp)   conv output tile (bf16 intermediate)
    stats_ref: (1, 2, Cp) f32, row 0 = channel sum, row 1 = channel sum of squares
    acc_ref  : (tm, Cp)   f32 accumulator scratch (only when the K axis is tiled)
    """

    def finalize(acc):
        out_ref[...] = acc.astype(out_ref.dtype)
        stats_ref[0, 0:1, :] = jnp.sum(acc, axis=0, keepdims=True)
        stats_ref[0, 1:2, :] = jnp.sum(acc * acc, axis=0, keepdims=True)

    if single_k:
        finalize(jnp.dot(lhs_ref[...], w_ref[...], preferred_element_type=jnp.float32))
    else:
        k = pl.program_id(1)

        @pl.when(k == 0)
        def _():
            acc_ref[...] = jnp.zeros_like(acc_ref)

        acc_ref[...] += jnp.dot(lhs_ref[...], w_ref[...],
                                preferred_element_type=jnp.float32)

        @pl.when(k == pl.num_programs(1) - 1)
        def _():
            finalize(acc_ref[...])


def _conv_bias_lrelu_kernel(lhs_ref, w_ref, shift_ref, out_ref, acc_ref=None, *, single_k):
    """use_norm=False path: conv + bias + LeakyReLU(0.2) fused into one kernel."""

    def finalize(acc):
        z = acc + shift_ref[...]
        out_ref[...] = jnp.where(z >= 0, z, 0.2 * z).astype(out_ref.dtype)

    if single_k:
        finalize(jnp.dot(lhs_ref[...], w_ref[...], preferred_element_type=jnp.float32))
    else:
        k = pl.program_id(1)

        @pl.when(k == 0)
        def _():
            acc_ref[...] = jnp.zeros_like(acc_ref)

        acc_ref[...] += jnp.dot(lhs_ref[...], w_ref[...],
                                preferred_element_type=jnp.float32)

        @pl.when(k == pl.num_programs(1) - 1)
        def _():
            finalize(acc_ref[...])


def _bn_lrelu_kernel(y_ref, scale_ref, shift_ref, o_ref):
    """Folded BN affine + LeakyReLU(0.2) on a lane-dense slab; compute in f32 (v5e VPU has no bf16)."""
    z = y_ref[...].astype(jnp.float32) * scale_ref[...] + shift_ref[...]
    o_ref[...] = jnp.where(z >= 0, z, 0.2 * z).astype(o_ref.dtype)


# --------------------------------------------------------------------------------------
# Tiling / VMEM budget
# --------------------------------------------------------------------------------------
_VMEM_BUDGET = 24 << 20   # headroom inside v7x's 64 MiB physical VMEM (32 MiB default scoped)


def _conv_tiling(M, K, Cp, out_bytes):
    """Pick (tm, tk, Kp, single_k, vmem_need) for the conv matmul."""
    # Row tile: as large as the mem-bound roofline likes, but capped at ceil(M/2) so grid_m >= 2
    # and both v7x TensorCores get work on the "parallel" M axis even for small batches.
    tm = max(8, min(1024, _round_up(pl.cdiv(M, 2), 8)))

    def need(tk, single):
        lhs = 2 * tm * tk * 2                                  # double-buffered bf16 LHS tiles
        wgt = tk * Cp * 2 if single else 2 * tk * Cp * 2       # resident vs double-buffered
        out = 2 * tm * Cp * out_bytes
        sts = 2 * 2 * Cp * 4
        acc = 0 if single else tm * Cp * 4
        return lhs + wgt + out + sts + acc

    # Preferred: whole contraction resident (weights DMA'd once, no accumulator / pl.when, no
    # K zero-padding at all -- the full-dim block exemption covers K not being a multiple of 128).
    if need(K, True) <= _VMEM_BUDGET:
        return tm, K, K, True, need(K, True)
    # Fallback for very large K: pad K only to a multiple of 128 and pick tk as a divisor of Kp.
    Kp = _round_up(K, 128)
    for tk in (1024, 512, 256, 128):
        if Kp % tk == 0 and need(tk, False) <= _VMEM_BUDGET:
            return tm, tk, Kp, False, need(tk, False)
    return tm, 128, Kp, False, need(128, False)


# --------------------------------------------------------------------------------------
# Wrapper
# --------------------------------------------------------------------------------------
@functools.partial(jax.jit, static_argnames=("use_norm",))
def down_block_2d(x_nchw, w_oihw, bias, gamma, beta, *, use_norm=True, eps=1e-5):
    """Forward pass of DownBlock2d. Inputs follow PyTorch conventions (NCHW / OIHW)."""
    # Cast to bf16 BEFORE any materialization: DEFAULT MXU precision truncates f32 operands to
    # bf16 anyway, so this only halves HBM traffic / intermediate copies.  (Keep f32 here if a
    # bit-exact f32 convolution is required.)
    x = jnp.transpose(x_nchw, (0, 2, 3, 1)).astype(jnp.bfloat16)   # NHWC
    w = jnp.transpose(w_oihw, (2, 3, 1, 0)).astype(jnp.bfloat16)   # HWIO
    N, H, W, Cin = x.shape
    KH, KW, _, Cout = w.shape
    pad = 1
    # TODO(synk): only stride=(1,1), padding=1, padding_mode='zeros' (the module defaults) are implemented.
    x_pad = jnp.pad(x, ((0, 0), (pad, pad), (pad, pad), (0, 0)))

    # im2col in the wrapper (bf16): (N*H*W, KH*KW*Cin), K order (kh, kw, cin) matching the weight
    # reshape below.
    # TODO(synk): replace with in-kernel shifted-window DMA (per-(kh,kw) K grid steps) to delete
    # this HBM intermediate entirely; kept wrapper-side (bf16, single pad) for robustness.
    patches = [x_pad[:, kh:kh + H, kw:kw + W, :]
               for kh in range(KH) for kw in range(KW)]
    lhs = jnp.concatenate(patches, axis=-1).reshape(N * H * W, KH * KW * Cin)
    w2 = w.reshape(KH * KW * Cin, Cout)

    M = N * H * W
    K = KH * KW * Cin
    # Lane-dense output channels; 256-wide blocks when Cout is large fill the 256x256 MXU of
    # v6e/v7x, 128 otherwise.
    Cp = _round_up(Cout, 256) if Cout >= 256 else _round_up(Cout, 128)

    conv_dtype = jnp.bfloat16 if use_norm else jnp.float32
    tm, tk, Kp, single_k, vmem_need = _conv_tiling(M, K, Cp, jnp.dtype(conv_dtype).itemsize)
    Mp = _round_up(M, tm)
    grid_m = Mp // tm
    vmem_limit = int(min(48 << 20, max(32 << 20, vmem_need + (4 << 20))))

    lhs_p = lhs if (Mp == M and Kp == K) else jnp.pad(lhs, ((0, Mp - M), (0, Kp - K)))
    w_p = w2 if (Kp == K and Cp == Cout) else jnp.pad(w2, ((0, Kp - K), (0, Cp - Cout)))

    if single_k:
        grid = (grid_m,)
        dims = ("parallel",)
        lhs_spec = pl.BlockSpec((tm, Kp), lambda i: (i, 0))
        w_spec = pl.BlockSpec((Kp, Cp), lambda i: (0, 0))       # constant index -> VMEM-resident
        out_spec = pl.BlockSpec((tm, Cp), lambda i: (i, 0))
        stats_spec = pl.BlockSpec((1, 2, Cp), lambda i: (i, 0, 0))
        vec_spec = pl.BlockSpec((1, Cp), lambda i: (0, 0))
        scratch = []
    else:
        grid = (grid_m, Kp // tk)
        dims = ("parallel", "arbitrary")
        lhs_spec = pl.BlockSpec((tm, tk), lambda i, k: (i, k))
        w_spec = pl.BlockSpec((tk, Cp), lambda i, k: (k, 0))
        out_spec = pl.BlockSpec((tm, Cp), lambda i, k: (i, 0))
        stats_spec = pl.BlockSpec((1, 2, Cp), lambda i, k: (i, 0, 0))
        vec_spec = pl.BlockSpec((1, Cp), lambda i, k: (0, 0))
        scratch = [pltpu.VMEM((tm, Cp), jnp.float32)]

    cparams = pltpu.CompilerParams(dimension_semantics=dims, vmem_limit_bytes=vmem_limit)
    bias = bias.astype(jnp.float32)

    if not use_norm:
        # Conv bias + LeakyReLU fused into the matmul epilogue: one pallas_call, one HBM write.
        shift_p = jnp.pad(bias, (0, Cp - Cout)).reshape(1, Cp)
        out_flat = pl.pallas_call(
            functools.partial(_conv_bias_lrelu_kernel, single_k=single_k),
            grid=grid,
            in_specs=[lhs_spec, w_spec, vec_spec],
            out_specs=out_spec,
            out_shape=jax.ShapeDtypeStruct((Mp, Cp), jnp.float32),
            scratch_shapes=scratch,
            compiler_params=cparams,
        )(lhs_p, w_p, shift_p)
    else:
        conv_out, stats = pl.pallas_call(
            functools.partial(_conv_stats_kernel, single_k=single_k),
            grid=grid,
            in_specs=[lhs_spec, w_spec],
            out_specs=(out_spec, stats_spec),
            out_shape=(jax.ShapeDtypeStruct((Mp, Cp), conv_dtype),
                       jax.ShapeDtypeStruct((grid_m, 2, Cp), jnp.float32)),
            scratch_shapes=scratch,
            compiler_params=cparams,
        )(lhs_p, w_p)

        # Train-mode BatchNorm2d: biased batch stats over (N, H, W).  The conv bias cancels
        # exactly under mean subtraction, so it is never added and is excluded from the stats.
        # Zero-padded rows contribute 0 to both sums, so count = M.
        # TODO(synk): single-pass E[x^2]-mean^2 in f32 can cancel for |mean| >> std on very large
        # layers; a Welford/two-pass combine would match PyTorch more tightly there.
        count = float(M)
        ch_sum = jnp.sum(stats[:, 0, :Cout], axis=0)
        ch_sq = jnp.sum(stats[:, 1, :Cout], axis=0)
        mean = ch_sum / count
        var = jnp.maximum(ch_sq / count - mean * mean, 0.0)
        scale = gamma.astype(jnp.float32) * lax.rsqrt(var + eps)
        shift = beta.astype(jnp.float32) - mean * scale

        scale_p = jnp.pad(scale, (0, Cp - Cout)).reshape(1, Cp)
        shift_p = jnp.pad(shift, (0, Cp - Cout)).reshape(1, Cp)

        out_flat = pl.pallas_call(
            _bn_lrelu_kernel,
            grid=(grid_m,),
            in_specs=[
                pl.BlockSpec((tm, Cp), lambda i: (i, 0)),
                pl.BlockSpec((1, Cp), lambda i: (0, 0)),
                pl.BlockSpec((1, Cp), lambda i: (0, 0)),
            ],
            out_specs=pl.BlockSpec((tm, Cp), lambda i: (i, 0)),
            out_shape=jax.ShapeDtypeStruct((Mp, Cp), jnp.float32),
            compiler_params=pltpu.CompilerParams(
                dimension_semantics=("parallel",), vmem_limit_bytes=32 << 20),
        )(conv_out, scale_p, shift_p)

    out = out_flat[:M, :Cout].reshape(N, H, W, Cout)
    return jnp.transpose(out, (0, 3, 1, 2))       # back to NCHW


if __name__ == "__main__":
    key = jax.random.PRNGKey(0)
    k1, k2, k3 = jax.random.split(key, 3)

    N, Cin, Cout, H, W = 2, 4, 8, 16, 16

    x = jax.random.normal(k1, (N, Cin, H, W), jnp.float32)

    # Conv2d(in=4, out=8, kernel=(3,3)) parameters, deterministic uniform init.
    fan_in = Cin * 3 * 3
    bound = 1.0 / np.sqrt(fan_in)
    w = jax.random.uniform(k2, (Cout, Cin, 3, 3), jnp.float32, -bound, bound)
    b = jax.random.uniform(k3, (Cout,), jnp.float32, -bound, bound)

    # BatchNorm2d(affine=True) init: weight=1, bias=0.
    gamma = jnp.ones((Cout,), jnp.float32)
    beta = jnp.zeros((Cout,), jnp.float32)

    out = down_block_2d(x, w, b, gamma, beta, use_norm=True)
    out = jax.block_until_ready(out)

    # Pure-JAX reference (conv + train-mode BN + leaky_relu(0.2)).  Both the kernel and the
    # reference use bf16 MXU operand precision; tolerance covers the operand truncation.
    ref = lax.conv_general_dilated(
        x, w, (1, 1), ((1, 1), (1, 1)),
        dimension_numbers=('NCHW', 'OIHW', 'NCHW')) + b.reshape(1, -1, 1, 1)
    mean = ref.mean(axis=(0, 2, 3), keepdims=True)
    var = ((ref - mean) ** 2).mean(axis=(0, 2, 3), keepdims=True)
    refn = (ref - mean) / jnp.sqrt(var + 1e-5) * gamma.reshape(1, -1, 1, 1) \
           + beta.reshape(1, -1, 1, 1)
    refn = jnp.where(refn >= 0, refn, 0.2 * refn)

    assert out.shape == (N, Cout, H, W)
    np.testing.assert_allclose(np.asarray(out), np.asarray(refn), rtol=2e-2, atol=2e-2)

    # Also exercise the use_norm=False path (fused conv + bias + LeakyReLU, single pallas_call).
    out2 = down_block_2d(x, w, b, gamma, beta, use_norm=False)
    out2 = jax.block_until_ready(out2)
    ref2 = jnp.where(ref >= 0, ref, 0.2 * ref)
    np.testing.assert_allclose(np.asarray(out2), np.asarray(ref2), rtol=2e-2, atol=2e-2)

    print("KERNEL_OK")
</pallas_src>

<mosaic_0001>
module attributes {stable_mosaic.version = 11 : i64} {
  func.func @_conv_stats_kernel(%arg0: i32, %arg1: memref<256x36xbf16, #tpu.memory_space<vmem>>, %arg2: memref<36x128xbf16, #tpu.memory_space<vmem>>, %arg3: memref<256x128xbf16, #tpu.memory_space<vmem>>, %arg4: memref<1x2x128xf32, #tpu.memory_space<vmem>>) attributes {dimension_semantics = [#tpu.dimension_semantics<parallel>], iteration_bounds = array<i64: 2>, scalar_prefetch = 0 : i64, scratch_operands = 0 : i64, tpu.core_type = #tpu.core_type<tc>, window_params = [{transform_indices = @transform_0, window_bounds = array<i64: 256, 36>}, {pipeline_mode = #tpu.pipeline_mode<synchronous>, transform_indices = @transform_1, window_bounds = array<i64: 36, 128>}, {transform_indices = @transform_2, window_bounds = array<i64: 256, 128>}, {transform_indices = @transform_3, window_bounds = array<i64: 1, 2, 128>}]} {
    %c0 = arith.constant 0 : index
    %c0_0 = arith.constant 0 : index
    %0 = vector.load %arg1[%c0, %c0_0] : memref<256x36xbf16, #tpu.memory_space<vmem>>, vector<256x36xbf16>
    %c0_1 = arith.constant 0 : index
    %c0_2 = arith.constant 0 : index
    %1 = vector.load %arg2[%c0_1, %c0_2] : memref<36x128xbf16, #tpu.memory_space<vmem>>, vector<36x128xbf16>
    %cst = arith.constant dense<0.000000e+00> : vector<256x128xf32>
    %2 = tpu.matmul %0, %1, %cst {dimension_numbers = #tpu.dot_dimension_numbers<[1], [0], [0], [1], [0, 0, 1, 1], [], []>} : vector<256x36xbf16>, vector<36x128xbf16>, vector<256x128xf32> -> vector<256x128xf32>
    %3 = arith.truncf %2 : vector<256x128xf32> to vector<256x128xbf16>
    %c0_3 = arith.constant 0 : index
    %c0_4 = arith.constant 0 : index
    %4 = vector.load %arg3[%c0_3, %c0_4] : memref<256x128xbf16, #tpu.memory_space<vmem>>, vector<256x128xbf16>
    tpu.vector_store %arg3[%c0_3, %c0_4], %3 {strides = array<i32>} : memref<256x128xbf16, #tpu.memory_space<vmem>>, vector<256x128xbf16>,
    %cst_5 = arith.constant dense<0.000000e+00> : vector<128xf32>
    %5 = vector.multi_reduction <add>, %2, %cst_5 [0] : vector<256x128xf32> to vector<128xf32>
    %6 = vector.shape_cast %5 : vector<128xf32> to vector<1x128xf32>
    %c0_6 = arith.constant 0 : index
    %c0_7 = arith.constant 0 : index
    %c0_8 = arith.constant 0 : index
    %7 = vector.load %arg4[%c0_6, %c0_7, %c0_8] : memref<1x2x128xf32, #tpu.memory_space<vmem>>, vector<1x1x128xf32>
    %8 = vector.shape_cast %7 : vector<1x1x128xf32> to vector<1x128xf32>
    %9 = vector.shape_cast %6 : vector<1x128xf32> to vector<1x1x128xf32>
    tpu.vector_store %arg4[%c0_6, %c0_7, %c0_8], %9 {strides = array<i32>} : memref<1x2x128xf32, #tpu.memory_space<vmem>>, vector<1x1x128xf32>,
    %10 = arith.mulf %2, %2 : vector<256x128xf32>
    %cst_9 = arith.constant dense<0.000000e+00> : vector<128xf32>
    %11 = vector.multi_reduction <add>, %10, %cst_9 [0] : vector<256x128xf32> to vector<128xf32>
    %12 = vector.shape_cast %11 : vector<128xf32> to vector<1x128xf32>
    %c0_10 = arith.constant 0 : index
    %c1 = arith.constant 1 : index
    %c0_11 = arith.constant 0 : index
    %13 = vector.load %arg4[%c0_10, %c1, %c0_11] : memref<1x2x128xf32, #tpu.memory_space<vmem>>, vector<1x1x128xf32>
    %14 = vector.shape_cast %13 : vector<1x1x128xf32> to vector<1x128xf32>
    %15 = vector.shape_cast %12 : vector<1x128xf32> to vector<1x1x128xf32>
    tpu.vector_store %arg4[%c0_10, %c1, %c0_11], %15 {strides = array<i32>} : memref<1x2x128xf32, #tpu.memory_space<vmem>>, vector<1x1x128xf32>,
    return
  }
  func.func @transform_0(%arg0: i32) -> (i32, i32) {
    %c0_i32 = arith.constant 0 : i32
    %c0_i32_0 = arith.constant 0 : i32
    return %arg0, %c0_i32 : i32, i32
  }
  func.func @transform_1(%arg0: i32) -> (i32, i32) {
    %c0_i32 = arith.constant 0 : i32
    %c0_i32_0 = arith.constant 0 : i32
    %c0_i32_1 = arith.constant 0 : i32
    return %c0_i32, %c0_i32_0 : i32, i32
  }
  func.func @transform_2(%arg0: i32) -> (i32, i32) {
    %c0_i32 = arith.constant 0 : i32
    %c0_i32_0 = arith.constant 0 : i32
    return %arg0, %c0_i32 : i32, i32
  }
  func.func @transform_3(%arg0: i32) -> (i32, i32, i32) {
    %c0_i32 = arith.constant 0 : i32
    %c0_i32_0 = arith.constant 0 : i32
    %c0_i32_1 = arith.constant 0 : i32
    return %arg0, %c0_i32, %c0_i32_0 : i32, i32, i32
  }
}

module attributes {stable_mosaic.version = 11 : i64} {
  func.func @_bn_lrelu_kernel(%arg0: i32, %arg1: memref<256x128xbf16, #tpu.memory_space<vmem>>, %arg2: memref<1x128xf32, #tpu.memory_space<vmem>>, %arg3: memref<1x128xf32, #tpu.memory_space<vmem>>, %arg4: memref<256x128xf32, #tpu.memory_space<vmem>>) attributes {dimension_semantics = [#tpu.dimension_semantics<parallel>], iteration_bounds = array<i64: 2>, scalar_prefetch = 0 : i64, scratch_operands = 0 : i64, tpu.core_type = #tpu.core_type<tc>, window_params = [{transform_indices = @transform_0, window_bounds = array<i64: 256, 128>}, {pipeline_mode = #tpu.pipeline_mode<synchronous>, transform_indices = @transform_1, window_bounds = array<i64: 1, 128>}, {pipeline_mode = #tpu.pipeline_mode<synchronous>, transform_indices = @transform_2, window_bounds = array<i64: 1, 128>}, {transform_indices = @transform_3, window_bounds = array<i64: 256, 128>}]} {
    %c0 = arith.constant 0 : index
    %c0_0 = arith.constant 0 : index
    %0 = vector.load %arg1[%c0, %c0_0] : memref<256x128xbf16, #tpu.memory_space<vmem>>, vector<256x128xbf16>
    %1 = arith.extf %0 : vector<256x128xbf16> to vector<256x128xf32>
    %c0_1 = arith.constant 0 : index
    %c0_2 = arith.constant 0 : index
    %2 = vector.load %arg2[%c0_1, %c0_2] : memref<1x128xf32, #tpu.memory_space<vmem>>, vector<1x128xf32>
    %3 = vector.broadcast %2 : vector<1x128xf32> to vector<256x128xf32>
    %4 = arith.mulf %1, %3 : vector<256x128xf32>
    %c0_3 = arith.constant 0 : index
    %c0_4 = arith.constant 0 : index
    %5 = vector.load %arg3[%c0_3, %c0_4] : memref<1x128xf32, #tpu.memory_space<vmem>>, vector<1x128xf32>
    %6 = vector.broadcast %5 : vector<1x128xf32> to vector<256x128xf32>
    %7 = arith.addf %4, %6 : vector<256x128xf32>
    %cst = arith.constant 0.000000e+00 : f32
    %8 = vector.broadcast %cst : f32 to vector<256x128xf32>
    %9 = arith.cmpf oge, %7, %8 : vector<256x128xf32>
    %cst_5 = arith.constant 2.000000e-01 : f32
    %10 = vector.broadcast %cst_5 : f32 to vector<256x128xf32>
    %11 = arith.mulf %10, %7 : vector<256x128xf32>
    %12 = arith.select %9, %7, %11 : vector<256x128xi1>, vector<256x128xf32>
    %c0_6 = arith.constant 0 : index
    %c0_7 = arith.constant 0 : index
    %13 = vector.load %arg4[%c0_6, %c0_7] : memref<256x128xf32, #tpu.memory_space<vmem>>, vector<256x128xf32>
    tpu.vector_store %arg4[%c0_6, %c0_7], %12 {strides = array<i32>} : memref<256x128xf32, #tpu.memory_space<vmem>>, vector<256x128xf32>,
    return
  }
  func.func @transform_0(%arg0: i32) -> (i32, i32) {
    %c0_i32 = arith.constant 0 : i32
    %c0_i32_0 = arith.constant 0 : i32
    return %arg0, %c0_i32 : i32, i32
  }
  func.func @transform_1(%arg0: i32) -> (i32, i32) {
    %c0_i32 = arith.constant 0 : i32
    %c0_i32_0 = arith.constant 0 : i32
    %c0_i32_1 = arith.constant 0 : i32
    return %c0_i32, %c0_i32_0 : i32, i32
  }
  func.func @transform_2(%arg0: i32) -> (i32, i32) {
    %c0_i32 = arith.constant 0 : i32
    %c0_i32_0 = arith.constant 0 : i32
    %c0_i32_1 = arith.constant 0 : i32
    return %c0_i32, %c0_i32_0 : i32, i32
  }
  func.func @transform_3(%arg0: i32) -> (i32, i32) {
    %c0_i32 = arith.constant 0 : i32
    %c0_i32_0 = arith.constant 0 : i32
    return %arg0, %c0_i32 : i32, i32
  }
}

</mosaic_0001>

<llo_original>
// kernel: down_block_2d.3
$region0: #{down_block_2d.3}
  #allocation0 [shape = 'u32[]', space=smem, size = 0x4, offset = 0x4, fixed_abs, tag = 'smem constant byte address 0x4 - core index']
  #allocation1 [shape = 'u32[144,128]{1,0:T(1,128)}', space=vmem, size = 0x12000, scoped, tag = 'internal scratch']
  %s0 = inlined_call_operand.vmem [shape: bf16[512,128], index: 0, kind: input, shape index: {}]
  %s1 = inlined_call_operand.vmem [shape: f32[1,128], index: 1, kind: input, shape index: {}]
  %s2 = inlined_call_operand.vmem [shape: f32[1,128], index: 2, kind: input, shape index: {}]
  %s3 = inlined_call_operand.vmem [shape: f32[512,128], index: 3, kind: output, shape index: {}]
  %s4 = sld [smem:[#allocation0]]
  $region45: #{down_block_2d.3} parent=0
    _
  %s6 = ssub.s32 1, %s4
  %s7 = scalar_select 0, %s6, %s4
  loop: start=0, step=1, limit=4
  $region2: #{down_block_2d.3} parent=0 // loop_pre_header
    _
  $region3: #{down_block_2d.3} parent=0 // loop_header
    %s9 = sphi 0, %s13
    %p10 = scmp.ge.s32.totalorder %s9, 4
    %s19 = sphi 0, %s21
    %s22 = sphi 0, %s19
    %s23 = sphi 0, %s22
    %s39 = sphi 0, %s23
    %s43 = sphi 0, %s43
    %s45 = sphi 0, %s43
    %s46 = sphi 0, %s45
    %s60 = sphi 0, %s46
    %s64 = sphi 0, %s64
    %s66 = sphi 0, %s64
    %s67 = sphi 0, %s66
    %s81 = sphi 0, %s67
    %s87 = sphi 0, %s89
    %s90 = sphi 0, %s87
    %s91 = sphi 0, %s90
    %s107 = sphi 0, %s91
  $region4: #{down_block_2d.3} parent=0 // loop_header_branch
    %12 = sbr.rel (%p10) target = $region8
  $region5: #{down_block_2d.3} parent=0 // loop_body
    %s14 = ssub.s32 %s9, 1
    %s15 = ssub.s32 %s9, 2
    %s16 = sadd.s32 %s9, 1
    %s17 = ssub.s32 %s9, %s16
    %p18 = scmp.eq.s32.totalorder %s17, 0
    %s20 = sadd.s32 %s19, 1
    %s21 = scalar_select %p18, %s19, %s20
    %p24 = pneg %p18
    %p25 = scmp.eq.s32.totalorder %s9, 1
    %p26 = por %p24, %p25
    %p27 = scmp.ne.s32.totalorder %s19, %s22
    %p28 = scmp.eq.s32.totalorder %s9, 0
    %p29 = por %p27, %p28
    %p30 = scmp.ne.s32.totalorder %s19, %s22
    %p31 = scmp.eq.s32.totalorder %s14, 1
    %p32 = por %p30, %p31
    %p33 = scmp.ne.s32.totalorder %s22, %s23
    %p34 = scmp.eq.s32.totalorder %s14, 0
    %p35 = por %p33, %p34
    %p36 = scmp.ne.s32.totalorder %s22, %s23
    %p37 = scmp.eq.s32.totalorder %s15, 1
    %p38 = por %p36, %p37
    %p40 = scmp.ne.s32.totalorder %s23, %s39
    %p41 = scmp.eq.s32.totalorder %s15, 0
    %p42 = por %p40, %p41
    %s44 = sadd.s32 %s43, 1
    %p47 = scmp.eq.s32.totalorder %s9, 1
    %p48 = scmp.ne.s32.totalorder %s43, %s45
    %p49 = scmp.eq.s32.totalorder %s9, 0
    %p50 = por %p48, %p49
    %p51 = scmp.ne.s32.totalorder %s43, %s45
    %p52 = scmp.eq.s32.totalorder %s14, 1
    %p53 = por %p51, %p52
    %p54 = scmp.ne.s32.totalorder %s45, %s46
    %p55 = scmp.eq.s32.totalorder %s14, 0
    %p56 = por %p54, %p55
    %p57 = scmp.ne.s32.totalorder %s45, %s46
    %p58 = scmp.eq.s32.totalorder %s15, 1
    %p59 = por %p57, %p58
    %p61 = scmp.ne.s32.totalorder %s46, %s60
    %p62 = scmp.eq.s32.totalorder %s15, 0
    %p63 = por %p61, %p62
    %s65 = sadd.s32 %s64, 1
    %p68 = scmp.eq.s32.totalorder %s9, 1
    %p69 = scmp.ne.s32.totalorder %s64, %s66
    %p70 = scmp.eq.s32.totalorder %s9, 0
    %p71 = por %p69, %p70
    %p72 = scmp.ne.s32.totalorder %s64, %s66
    %p73 = scmp.eq.s32.totalorder %s14, 1
    %p74 = por %p72, %p73
    %p75 = scmp.ne.s32.totalorder %s66, %s67
    %p76 = scmp.eq.s32.totalorder %s14, 0
    %p77 = por %p75, %p76
    %p78 = scmp.ne.s32.totalorder %s66, %s67
    %p79 = scmp.eq.s32.totalorder %s15, 1
    %p80 = por %p78, %p79
    %p82 = scmp.ne.s32.totalorder %s67, %s81
    %p83 = scmp.eq.s32.totalorder %s15, 0
    %p84 = por %p82, %p83
    %s85 = ssub.s32 %s9, %s16
    %p86 = scmp.eq.s32.totalorder %s85, 0
    %s88 = sadd.s32 %s87, 1
    %s89 = scalar_select %p86, %s87, %s88
    %p92 = pneg %p86
    %p93 = scmp.eq.s32.totalorder %s9, 1
    %p94 = por %p92, %p93
    %p95 = scmp.ne.s32.totalorder %s87, %s90
    %p96 = scmp.eq.s32.totalorder %s9, 0
    %p97 = por %p95, %p96
    %p98 = scmp.ne.s32.totalorder %s87, %s90
    %p99 = scmp.eq.s32.totalorder %s14, 1
    %p100 = por %p98, %p99
    %p101 = scmp.ne.s32.totalorder %s90, %s91
    %p102 = scmp.eq.s32.totalorder %s14, 0
    %p103 = por %p101, %p102
    %p104 = scmp.ne.s32.totalorder %s90, %s91
    %p105 = scmp.eq.s32.totalorder %s15, 1
    %p106 = por %p104, %p105
    %p108 = scmp.ne.s32.totalorder %s91, %s107
    %p109 = scmp.eq.s32.totalorder %s15, 0
    %p110 = por %p108, %p109
    %p111 = scmp.le.s32.totalorder 1, %s9
    %p112 = scmp.lt.s32.totalorder %s9, 3
    %p113 = pnand %p111, %p112
    %p114 = pneg %p113
    // Predicated region
    $region9: #{down_block_2d.3} parent=5 // pred_check
      _
    $region10: #{down_block_2d.3} parent=5 // pred_check_branch
      %116 = sbr.rel (%p113) target = $region12
    $region11: #{down_block_2d.3} parent=5 // pred_region
      %s117 = ssub.s32 %s9, 1
      // Predicated region
      $region13: #{down_block_2d.3} parent=11 // pred_check
        %p118 = pneg %p56
      $region14: #{down_block_2d.3} parent=11 // pred_check_branch
        %120 = sbr.rel (%p118) target = $region16
      $region15: #{down_block_2d.3} parent=11 // pred_region
        _
      $region16: #{down_block_2d.3} parent=11 // pred_fallthru
        _
      // Predicated region
      $region17: #{down_block_2d.3} parent=11 // pred_check
        %p121 = pneg %p77
      $region18: #{down_block_2d.3} parent=11 // pred_check_branch
        %123 = sbr.rel (%p121) target = $region20
      $region19: #{down_block_2d.3} parent=11 // pred_region
        _
      $region20: #{down_block_2d.3} parent=11 // pred_fallthru
        _
    $region12: #{down_block_2d.3} parent=5 // pred_fallthru
      _
    %p124 = scmp.lt.s32.totalorder %s9, 2
    // Predicated region
    $region21: #{down_block_2d.3} parent=5 // pred_check
      %p125 = pneg %p124
    $region22: #{down_block_2d.3} parent=5 // pred_check_branch
      %127 = sbr.rel (%p125) target = $region24
    $region23: #{down_block_2d.3} parent=5 // pred_region
      // Predicated region
      $region25: #{down_block_2d.3} parent=23 // pred_check
        %p128 = pneg %p29
      $region26: #{down_block_2d.3} parent=23 // pred_check_branch
        %130 = sbr.rel (%p128) target = $region28
      $region27: #{down_block_2d.3} parent=23 // pred_region
        %s131 = smul.u32 32, %s9
        %p132 = scmp.lt.s32.totalorder %s131, 63
        %s133 = scalar_select %p132, %s131, 63
        %s134 = smul.addr %s133, 4
        %s135 = scalar_lea.vmem %s0, %s134
        %s136 = smul.u32 32, %s9
      $region28: #{down_block_2d.3} parent=23 // pred_fallthru
        _
    $region24: #{down_block_2d.3} parent=5 // pred_fallthru
      _
    %p137 = scmp.le.s32.totalorder 1, %s9
    %p138 = scmp.lt.s32.totalorder %s9, 3
    %p139 = pnand %p137, %p138
    %p140 = pneg %p139
    // Predicated region
    $region29: #{down_block_2d.3} parent=5 // pred_check
      _
    $region30: #{down_block_2d.3} parent=5 // pred_check_branch
      %142 = sbr.rel (%p139) target = $region32
    $region31: #{down_block_2d.3} parent=5 // pred_region
      %s143 = ssub.s32 %s9, 1
      %s144 = smul.u32 32, %s14
      %p145 = scmp.lt.s32.totalorder %s144, 63
      %s146 = scalar_select %p145, %s144, 63
      %s147 = smul.addr %s146, 4
      %s148 = scalar_lea.vmem %s0, %s147
      %p149 = pneg %p35
      %p150 = pneg %p32
      %p151 = pneg %p56
      %p152 = pneg %p53
      %p153 = pneg %p77
      %p154 = pneg %p74
      %p155 = pneg %p103
      %p156 = pneg %p100
      %s157 = smul.u32 32, %s14
      %p158 = scmp.lt.s32.totalorder %s157, 63
      %s159 = scalar_select %p158, %s157, 63
      %s160 = smul.addr %s159, 8
      %s161 = scalar_lea.vmem %s3, %s160
      %s162 = smul.u32 32, %s14
      %p163 = scmp.lt.s32.totalorder %s162, 63
      %s164 = scalar_select %p163, %s162, 63
      %s165 = smul.addr %s164, 4
      %s166 = scalar_lea.vmem %s0, %s165
      %s167 = smul.u32 32, %s14
      %s168 = smul.u32 32, %s14
      %p169 = scmp.lt.s32.totalorder %s168, 63
      %s170 = scalar_select %p169, %s168, 63
      %s171 = smul.addr %s170, 8
      %s172 = scalar_lea.vmem %s3, %s171
      %s173 = smul.u32 32, %s14
      %v174 = vld [vmem:[%s166] sm:$0xf]
      %v175 = vld [vmem:[%s166 + $0x4] sm:$0xf]
      %v176 = vld [vmem:[%s166 + $0x8] sm:$0xf]
      %v177 = vld [vmem:[%s166 + $0xc] sm:$0xf]
      %v178 = vld [vmem:[%s166 + $0x10] sm:$0xf]
      %v179 = vld [vmem:[%s166 + $0x14] sm:$0xf]
      %v180 = vld [vmem:[%s166 + $0x18] sm:$0xf]
      %v181 = vld [vmem:[%s166 + $0x1c] sm:$0xf]
      %v182 = vld [vmem:[%s166 + $0x20] sm:$0xf]
      %v183 = vld [vmem:[%s166 + $0x24] sm:$0xf]
      %v184 = vld [vmem:[%s166 + $0x28] sm:$0xf]
      %v185 = vld [vmem:[%s166 + $0x2c] sm:$0xf]
      %v186 = vld [vmem:[%s166 + $0x30] sm:$0xf]
      %v187 = vld [vmem:[%s166 + $0x34] sm:$0xf]
      %v188 = vld [vmem:[%s166 + $0x38] sm:$0xf]
      %v189 = vld [vmem:[%s166 + $0x3c] sm:$0xf]
      %v190 = vld [vmem:[%s166 + $0x40] sm:$0xf]
      %v191 = vld [vmem:[%s166 + $0x44] sm:$0xf]
      %v192 = vld [vmem:[%s166 + $0x48] sm:$0xf]
      %v193 = vld [vmem:[%s166 + $0x4c] sm:$0xf]
      %v194 = vld [vmem:[%s166 + $0x50] sm:$0xf]
      %v195 = vld [vmem:[%s166 + $0x54] sm:$0xf]
      %v196 = vld [vmem:[%s166 + $0x58] sm:$0xf]
      %v197 = vld [vmem:[%s166 + $0x5c] sm:$0xf]
      %v198 = vld [vmem:[%s166 + $0x60] sm:$0xf]
      %v199 = vld [vmem:[%s166 + $0x64] sm:$0xf]
      %v200 = vld [vmem:[%s166 + $0x68] sm:$0xf]
      %v201 = vld [vmem:[%s166 + $0x6c] sm:$0xf]
      %v202 = vld [vmem:[%s166 + $0x70] sm:$0xf]
      %v203 = vld [vmem:[%s166 + $0x74] sm:$0xf]
      %v204 = vld [vmem:[%s166 + $0x78] sm:$0xf]
      %v205 = vld [vmem:[%s166 + $0x7c] sm:$0xf]
      %v206 = vunpack.c.l.bf16 %v174
      %v207 = vunpack.c.l.bf16 %v175
      %v208 = vunpack.c.l.bf16 %v176
      %v209 = vunpack.c.l.bf16 %v177
      %v210 = vunpack.c.l.bf16 %v178
      %v211 = vunpack.c.l.bf16 %v179
      %v212 = vunpack.c.l.bf16 %v180
      %v213 = vunpack.c.l.bf16 %v181
      %v214 = vunpack.c.l.bf16 %v182
      %v215 = vunpack.c.l.bf16 %v183
      %v216 = vunpack.c.l.bf16 %v184
      %v217 = vunpack.c.l.bf16 %v185
      %v218 = vunpack.c.l.bf16 %v186
      %v219 = vunpack.c.l.bf16 %v187
      %v220 = vunpack.c.l.bf16 %v188
      %v221 = vunpack.c.l.bf16 %v189
      %v222 = vunpack.c.l.bf16 %v190
      %v223 = vunpack.c.l.bf16 %v191
      %v224 = vunpack.c.l.bf16 %v192
      %v225 = vunpack.c.l.bf16 %v193
      %v226 = vunpack.c.l.bf16 %v194
      %v227 = vunpack.c.l.bf16 %v195
      %v228 = vunpack.c.l.bf16 %v196
      %v229 = vunpack.c.l.bf16 %v197
      %v230 = vunpack.c.l.bf16 %v198
      %v231 = vunpack.c.l.bf16 %v199
      %v232 = vunpack.c.l.bf16 %v200
      %v233 = vunpack.c.l.bf16 %v201
      %v234 = vunpack.c.l.bf16 %v202
      %v235 = vunpack.c.l.bf16 %v203
      %v236 = vunpack.c.l.bf16 %v204
      %v237 = vunpack.c.l.bf16 %v205
      %v238 = vld [vmem:[%s1] sm:$0x1]
      %v240 = vlaneseq
      %v241 = vshrl.u32 %v240, 7
      %v242 = vsub.s32 0, %v241
      %v243 = vrot.slane %v238, %v242
      %v245 = vmul.f32 %v206, %v243
      %v246 = vmul.f32 %v207, %v243
      %v247 = vmul.f32 %v208, %v243
      %v248 = vmul.f32 %v209, %v243
      %v249 = vmul.f32 %v210, %v243
      %v250 = vmul.f32 %v211, %v243
      %v251 = vmul.f32 %v212, %v243
      %v252 = vmul.f32 %v213, %v243
      %v253 = vmul.f32 %v214, %v243
      %v254 = vmul.f32 %v215, %v243
      %v255 = vmul.f32 %v216, %v243
      %v256 = vmul.f32 %v217, %v243
      %v257 = vmul.f32 %v218, %v243
      %v258 = vmul.f32 %v219, %v243
      %v259 = vmul.f32 %v220, %v243
      %v260 = vmul.f32 %v221, %v243
      %v261 = vmul.f32 %v222, %v243
      %v262 = vmul.f32 %v223, %v243
      %v263 = vmul.f32 %v224, %v243
      %v264 = vmul.f32 %v225, %v243
      %v265 = vmul.f32 %v226, %v243
      %v266 = vmul.f32 %v227, %v243
      %v267 = vmul.f32 %v228, %v243
      %v268 = vmul.f32 %v229, %v243
      %v269 = vmul.f32 %v230, %v243
      %v270 = vmul.f32 %v231, %v243
      %v271 = vmul.f32 %v232, %v243
      %v272 = vmul.f32 %v233, %v243
      %v273 = vmul.f32 %v234, %v243
      %v274 = vmul.f32 %v235, %v243
      %v275 = vmul.f32 %v236, %v243
      %v276 = vmul.f32 %v237, %v243
      %v277 = vld [vmem:[%s2] sm:$0x1]
      %v279 = vlaneseq
      %v280 = vshrl.u32 %v279, 7
      %v281 = vsub.s32 0, %v280
      %v282 = vrot.slane %v277, %v281
      %v284 = vadd.f32 %v245, %v282
      %v285 = vadd.f32 %v246, %v282
      %v286 = vadd.f32 %v247, %v282
      %v287 = vadd.f32 %v248, %v282
      %v288 = vadd.f32 %v249, %v282
      %v289 = vadd.f32 %v250, %v282
      %v290 = vadd.f32 %v251, %v282
      %v291 = vadd.f32 %v252, %v282
      %v292 = vadd.f32 %v253, %v282
      %v293 = vadd.f32 %v254, %v282
      %v294 = vadd.f32 %v255, %v282
      %v295 = vadd.f32 %v256, %v282
      %v296 = vadd.f32 %v257, %v282
      %v297 = vadd.f32 %v258, %v282
      %v298 = vadd.f32 %v259, %v282
      %v299 = vadd.f32 %v260, %v282
      %v300 = vadd.f32 %v261, %v282
      %v301 = vadd.f32 %v262, %v282
      %v302 = vadd.f32 %v263, %v282
      %v303 = vadd.f32 %v264, %v282
      %v304 = vadd.f32 %v265, %v282
      %v305 = vadd.f32 %v266, %v282
      %v306 = vadd.f32 %v267, %v282
      %v307 = vadd.f32 %v268, %v282
      %v308 = vadd.f32 %v269, %v282
      %v309 = vadd.f32 %v270, %v282
      %v310 = vadd.f32 %v271, %v282
      %v311 = vadd.f32 %v272, %v282
      %v312 = vadd.f32 %v273, %v282
      %v313 = vadd.f32 %v274, %v282
      %v314 = vadd.f32 %v275, %v282
      %v315 = vadd.f32 %v276, %v282
      %vm316 = vcmp.ge.f32.partialorder %v284, 0.0
      %vm317 = vcmp.ge.f32.partialorder %v285, 0.0
      %vm318 = vcmp.ge.f32.partialorder %v286, 0.0
      %vm319 = vcmp.ge.f32.partialorder %v287, 0.0
      %vm320 = vcmp.ge.f32.partialorder %v288, 0.0
      %vm321 = vcmp.ge.f32.partialorder %v289, 0.0
      %vm322 = vcmp.ge.f32.partialorder %v290, 0.0
      %vm323 = vcmp.ge.f32.partialorder %v291, 0.0
      %vm324 = vcmp.ge.f32.partialorder %v292, 0.0
      %vm325 = vcmp.ge.f32.partialorder %v293, 0.0
      %vm326 = vcmp.ge.f32.partialorder %v294, 0.0
      %vm327 = vcmp.ge.f32.partialorder %v295, 0.0
      %vm328 = vcmp.ge.f32.partialorder %v296, 0.0
      %vm329 = vcmp.ge.f32.partialorder %v297, 0.0
      %vm330 = vcmp.ge.f32.partialorder %v298, 0.0
      %vm331 = vcmp.ge.f32.partialorder %v299, 0.0
      %vm332 = vcmp.ge.f32.partialorder %v300, 0.0
      %vm333 = vcmp.ge.f32.partialorder %v301, 0.0
      %vm334 = vcmp.ge.f32.partialorder %v302, 0.0
      %vm335 = vcmp.ge.f32.partialorder %v303, 0.0
      %vm336 = vcmp.ge.f32.partialorder %v304, 0.0
      %vm337 = vcmp.ge.f32.partialorder %v305, 0.0
      %vm338 = vcmp.ge.f32.partialorder %v306, 0.0
      %vm339 = vcmp.ge.f32.partialorder %v307, 0.0
      %vm340 = vcmp.ge.f32.partialorder %v308, 0.0
      %vm341 = vcmp.ge.f32.partialorder %v309, 0.0
      %vm342 = vcmp.ge.f32.partialorder %v310, 0.0
      %vm343 = vcmp.ge.f32.partialorder %v311, 0.0
      %vm344 = vcmp.ge.f32.partialorder %v312, 0.0
      %vm345 = vcmp.ge.f32.partialorder %v313, 0.0
      %vm346 = vcmp.ge.f32.partialorder %v314, 0.0
      %vm347 = vcmp.ge.f32.partialorder %v315, 0.0
      %v348 = vmul.f32 %v284, 0.2
      %v349 = vmul.f32 %v285, 0.2
      %v350 = vmul.f32 %v286, 0.2
      %v351 = vmul.f32 %v287, 0.2
      %v352 = vmul.f32 %v288, 0.2
      %v353 = vmul.f32 %v289, 0.2
      %v354 = vmul.f32 %v290, 0.2
      %v355 = vmul.f32 %v291, 0.2
      %v356 = vmul.f32 %v292, 0.2
      %v357 = vmul.f32 %v293, 0.2
      %v358 = vmul.f32 %v294, 0.2
      %v359 = vmul.f32 %v295, 0.2
      %v360 = vmul.f32 %v296, 0.2
      %v361 = vmul.f32 %v297, 0.2
      %v362 = vmul.f32 %v298, 0.2
      %v363 = vmul.f32 %v299, 0.2
      %v364 = vmul.f32 %v300, 0.2
      %v365 = vmul.f32 %v301, 0.2
      %v366 = vmul.f32 %v302, 0.2
      %v367 = vmul.f32 %v303, 0.2
      %v368 = vmul.f32 %v304, 0.2
      %v369 = vmul.f32 %v305, 0.2
      %v370 = vmul.f32 %v306, 0.2
      %v371 = vmul.f32 %v307, 0.2
      %v372 = vmul.f32 %v308, 0.2
      %v373 = vmul.f32 %v309, 0.2
      %v374 = vmul.f32 %v310, 0.2
      %v375 = vmul.f32 %v311, 0.2
      %v376 = vmul.f32 %v312, 0.2
      %v377 = vmul.f32 %v313, 0.2
      %v378 = vmul.f32 %v314, 0.2
      %v379 = vmul.f32 %v315, 0.2
      %v380 = vsel %vm316, %v284, %v348
      %v381 = vsel %vm317, %v285, %v349
      %v382 = vsel %vm318, %v286, %v350
      %v383 = vsel %vm319, %v287, %v351
      %v384 = vsel %vm320, %v288, %v352
      %v385 = vsel %vm321, %v289, %v353
      %v386 = vsel %vm322, %v290, %v354
      %v387 = vsel %vm323, %v291, %v355
      %v388 = vsel %vm324, %v292, %v356
      %v389 = vsel %vm325, %v293, %v357
      %v390 = vsel %vm326, %v294, %v358
      %v391 = vsel %vm327, %v295, %v359
      %v392 = vsel %vm328, %v296, %v360
      %v393 = vsel %vm329, %v297, %v361
      %v394 = vsel %vm330, %v298, %v362
      %v395 = vsel %vm331, %v299, %v363
      %v396 = vsel %vm332, %v300, %v364
      %v397 = vsel %vm333, %v301, %v365
      %v398 = vsel %vm334, %v302, %v366
      %v399 = vsel %vm335, %v303, %v367
      %v400 = vsel %vm336, %v304, %v368
      %v401 = vsel %vm337, %v305, %v369
      %v402 = vsel %vm338, %v306, %v370
      %v403 = vsel %vm339, %v307, %v371
      %v404 = vsel %vm340, %v308, %v372
      %v405 = vsel %vm341, %v309, %v373
      %v406 = vsel %vm342, %v310, %v374
      %v407 = vsel %vm343, %v311, %v375
      %v408 = vsel %vm344, %v312, %v376
      %v409 = vsel %vm345, %v313, %v377
      %v410 = vsel %vm346, %v314, %v378
      %v411 = vsel %vm347, %v315, %v379
      %412 = vst [vmem:[%s172] sm:$0xff] %v380
      %413 = vst [vmem:[%s172 + $0x8] sm:$0xff] %v381
      %414 = vst [vmem:[%s172 + $0x10] sm:$0xff] %v382
      %415 = vst [vmem:[%s172 + $0x18] sm:$0xff] %v383
      %416 = vst [vmem:[%s172 + $0x20] sm:$0xff] %v384
      %417 = vst [vmem:[%s172 + $0x28] sm:$0xff] %v385
      %418 = vst [vmem:[%s172 + $0x30] sm:$0xff] %v386
      %419 = vst [vmem:[%s172 + $0x38] sm:$0xff] %v387
      %420 = vst [vmem:[%s172 + $0x40] sm:$0xff] %v388
      %421 = vst [vmem:[%s172 + $0x48] sm:$0xff] %v389
      %422 = vst [vmem:[%s172 + $0x50] sm:$0xff] %v390
      %423 = vst [vmem:[%s172 + $0x58] sm:$0xff] %v391
      %424 = vst [vmem:[%s172 + $0x60] sm:$0xff] %v392
      %425 = vst [vmem:[%s172 + $0x68] sm:$0xff] %v393
      %426 = vst [vmem:[%s172 + $0x70] sm:$0xff] %v394
      %427 = vst [vmem:[%s172 + $0x78] sm:$0xff] %v395
      %428 = vst [vmem:[%s172 + $0x80] sm:$0xff] %v396
      %429 = vst [vmem:[%s172 + $0x88] sm:$0xff] %v397
      %430 = vst [vmem:[%s172 + $0x90] sm:$0xff] %v398
      %431 = vst [vmem:[%s172 + $0x98] sm:$0xff] %v399
      %432 = vst [vmem:[%s172 + $0xa0] sm:$0xff] %v400
      %433 = vst [vmem:[%s172 + $0xa8] sm:$0xff] %v401
      %434 = vst [vmem:[%s172 + $0xb0] sm:$0xff] %v402
      %435 = vst [vmem:[%s172 + $0xb8] sm:$0xff] %v403
      %436 = vst [vmem:[%s172 + $0xc0] sm:$0xff] %v404
      %437 = vst [vmem:[%s172 + $0xc8] sm:$0xff] %v405
      %438 = vst [vmem:[%s172 + $0xd0] sm:$0xff] %v406
      %439 = vst [vmem:[%s172 + $0xd8] sm:$0xff] %v407
      %440 = vst [vmem:[%s172 + $0xe0] sm:$0xff] %v408
      %441 = vst [vmem:[%s172 + $0xe8] sm:$0xff] %v409
      %442 = vst [vmem:[%s172 + $0xf0] sm:$0xff] %v410
      %443 = vst [vmem:[%s172 + $0xf8] sm:$0xff] %v411
      %s444 = smul.u32 32, %s14
      %p445 = scmp.lt.s32.totalorder %s444, 63
      %s446 = scalar_select %p445, %s444, 63
      %s447 = smul.addr %s446, 8
      %s448 = scalar_lea.vmem %s3, %s447
      // Predicated region
      $region33: #{down_block_2d.3} parent=31 // pred_check
        %p449 = pneg %p100
      $region34: #{down_block_2d.3} parent=31 // pred_check_branch
        %451 = sbr.rel (%p449) target = $region36
      $region35: #{down_block_2d.3} parent=31 // pred_region
        %s452 = smul.u32 32, %s14
      $region36: #{down_block_2d.3} parent=31 // pred_fallthru
        _
    $region32: #{down_block_2d.3} parent=5 // pred_fallthru
      _
    %p453 = scmp.le.s32.totalorder 2, %s9
    // Predicated region
    $region37: #{down_block_2d.3} parent=5 // pred_check
      %p454 = pneg %p453
    $region38: #{down_block_2d.3} parent=5 // pred_check_branch
      %456 = sbr.rel (%p454) target = $region40
    $region39: #{down_block_2d.3} parent=5 // pred_region
      %s457 = ssub.s32 %s9, 2
      // Predicated region
      $region41: #{down_block_2d.3} parent=39 // pred_check
        %p458 = pneg %p106
      $region42: #{down_block_2d.3} parent=39 // pred_check_branch
        %460 = sbr.rel (%p458) target = $region44
      $region43: #{down_block_2d.3} parent=39 // pred_region
        %s461 = smul.u32 32, %s15
        %p462 = scmp.lt.s32.totalorder %s461, 63
        %s463 = scalar_select %p462, %s461, 63
        %s464 = smul.addr %s463, 8
        %s465 = scalar_lea.vmem %s3, %s464
      $region44: #{down_block_2d.3} parent=39 // pred_fallthru
        _
    $region40: #{down_block_2d.3} parent=5 // pred_fallthru
      _
  $region6: #{down_block_2d.3} parent=0 // loop_footer
    %s13 = sadd.s32 1, %s9
  $region7: #{down_block_2d.3} parent=0 // loop_footer_branch
    %8 = sbr.rel target = $region3
  $region8: #{down_block_2d.3} parent=0 // loop_exit
    _

// kernel: down_block_2d.2
$region0: #{down_block_2d.2}
  #allocation0 [shape = 'u32[]', space=smem, size = 0x4, offset = 0x4, fixed_abs, tag = 'smem constant byte address 0x4 - core index']
  #allocation1 [shape = 'u32[144,128]{1,0:T(1,128)}', space=vmem, size = 0x12000, scoped, tag = 'internal scratch']
  %s0 = inlined_call_operand.vmem [shape: bf16[512,36], index: 0, kind: input, shape index: {}]
  %s1 = inlined_call_operand.vmem [shape: bf16[36,128], index: 1, kind: input, shape index: {}]
  %s2 = inlined_call_operand.vmem [shape: bf16[512,128], index: 2, kind: output, shape index: {0}]
  %s3 = inlined_call_operand.vmem [shape: f32[2,2,128], index: 3, kind: output, shape index: {1}]
  %4 = xla_tuple %s2, %s3
  %s5 = sld [smem:[#allocation0]]
  $region49: #{down_block_2d.2} parent=0
    _
  %s7 = ssub.s32 1, %s5
  %s8 = scalar_select 0, %s7, %s5
  loop: start=0, step=1, limit=4
  $region2: #{down_block_2d.2} parent=0 // loop_pre_header
    _
  $region3: #{down_block_2d.2} parent=0 // loop_header
    %s10 = sphi 0, %s14
    %p11 = scmp.ge.s32.totalorder %s10, 4
    %s20 = sphi 0, %s22
    %s23 = sphi 0, %s20
    %s24 = sphi 0, %s23
    %s40 = sphi 0, %s24
    %s44 = sphi 0, %s44
    %s46 = sphi 0, %s44
    %s47 = sphi 0, %s46
    %s61 = sphi 0, %s47
    %s67 = sphi 0, %s69
    %s70 = sphi 0, %s67
    %s71 = sphi 0, %s70
    %s87 = sphi 0, %s71
    %s93 = sphi 0, %s95
    %s96 = sphi 0, %s93
    %s97 = sphi 0, %s96
    %s113 = sphi 0, %s97
  $region4: #{down_block_2d.2} parent=0 // loop_header_branch
    %13 = sbr.rel (%p11) target = $region8
  $region5: #{down_block_2d.2} parent=0 // loop_body
    %s15 = ssub.s32 %s10, 1
    %s16 = ssub.s32 %s10, 2
    %s17 = sadd.s32 %s10, 1
    %s18 = ssub.s32 %s10, %s17
    %p19 = scmp.eq.s32.totalorder %s18, 0
    %s21 = sadd.s32 %s20, 1
    %s22 = scalar_select %p19, %s20, %s21
    %p25 = pneg %p19
    %p26 = scmp.eq.s32.totalorder %s10, 1
    %p27 = por %p25, %p26
    %p28 = scmp.ne.s32.totalorder %s20, %s23
    %p29 = scmp.eq.s32.totalorder %s10, 0
    %p30 = por %p28, %p29
    %p31 = scmp.ne.s32.totalorder %s20, %s23
    %p32 = scmp.eq.s32.totalorder %s15, 1
    %p33 = por %p31, %p32
    %p34 = scmp.ne.s32.totalorder %s23, %s24
    %p35 = scmp.eq.s32.totalorder %s15, 0
    %p36 = por %p34, %p35
    %p37 = scmp.ne.s32.totalorder %s23, %s24
    %p38 = scmp.eq.s32.totalorder %s16, 1
    %p39 = por %p37, %p38
    %p41 = scmp.ne.s32.totalorder %s24, %s40
    %p42 = scmp.eq.s32.totalorder %s16, 0
    %p43 = por %p41, %p42
    %s45 = sadd.s32 %s44, 1
    %p48 = scmp.eq.s32.totalorder %s10, 1
    %p49 = scmp.ne.s32.totalorder %s44, %s46
    %p50 = scmp.eq.s32.totalorder %s10, 0
    %p51 = por %p49, %p50
    %p52 = scmp.ne.s32.totalorder %s44, %s46
    %p53 = scmp.eq.s32.totalorder %s15, 1
    %p54 = por %p52, %p53
    %p55 = scmp.ne.s32.totalorder %s46, %s47
    %p56 = scmp.eq.s32.totalorder %s15, 0
    %p57 = por %p55, %p56
    %p58 = scmp.ne.s32.totalorder %s46, %s47
    %p59 = scmp.eq.s32.totalorder %s16, 1
    %p60 = por %p58, %p59
    %p62 = scmp.ne.s32.totalorder %s47, %s61
    %p63 = scmp.eq.s32.totalorder %s16, 0
    %p64 = por %p62, %p63
    %s65 = ssub.s32 %s10, %s17
    %p66 = scmp.eq.s32.totalorder %s65, 0
    %s68 = sadd.s32 %s67, 1
    %s69 = scalar_select %p66, %s67, %s68
    %p72 = pneg %p66
    %p73 = scmp.eq.s32.totalorder %s10, 1
    %p74 = por %p72, %p73
    %p75 = scmp.ne.s32.totalorder %s67, %s70
    %p76 = scmp.eq.s32.totalorder %s10, 0
    %p77 = por %p75, %p76
    %p78 = scmp.ne.s32.totalorder %s67, %s70
    %p79 = scmp.eq.s32.totalorder %s15, 1
    %p80 = por %p78, %p79
    %p81 = scmp.ne.s32.totalorder %s70, %s71
    %p82 = scmp.eq.s32.totalorder %s15, 0
    %p83 = por %p81, %p82
    %p84 = scmp.ne.s32.totalorder %s70, %s71
    %p85 = scmp.eq.s32.totalorder %s16, 1
    %p86 = por %p84, %p85
    %p88 = scmp.ne.s32.totalorder %s71, %s87
    %p89 = scmp.eq.s32.totalorder %s16, 0
    %p90 = por %p88, %p89
    %s91 = ssub.s32 %s10, %s17
    %p92 = scmp.eq.s32.totalorder %s91, 0
    %s94 = sadd.s32 %s93, 1
    %s95 = scalar_select %p92, %s93, %s94
    %p98 = pneg %p92
    %p99 = scmp.eq.s32.totalorder %s10, 1
    %p100 = por %p98, %p99
    %p101 = scmp.ne.s32.totalorder %s93, %s96
    %p102 = scmp.eq.s32.totalorder %s10, 0
    %p103 = por %p101, %p102
    %p104 = scmp.ne.s32.totalorder %s93, %s96
    %p105 = scmp.eq.s32.totalorder %s15, 1
    %p106 = por %p104, %p105
    %p107 = scmp.ne.s32.totalorder %s96, %s97
    %p108 = scmp.eq.s32.totalorder %s15, 0
    %p109 = por %p107, %p108
    %p110 = scmp.ne.s32.totalorder %s96, %s97
    %p111 = scmp.eq.s32.totalorder %s16, 1
    %p112 = por %p110, %p111
    %p114 = scmp.ne.s32.totalorder %s97, %s113
    %p115 = scmp.eq.s32.totalorder %s16, 0
    %p116 = por %p114, %p115
    %p117 = scmp.le.s32.totalorder 1, %s10
    %p118 = scmp.lt.s32.totalorder %s10, 3
    %p119 = pnand %p117, %p118
    %p120 = pneg %p119
    // Predicated region
    $region9: #{down_block_2d.2} parent=5 // pred_check
      _
    $region10: #{down_block_2d.2} parent=5 // pred_check_branch
      %122 = sbr.rel (%p119) target = $region12
    $region11: #{down_block_2d.2} parent=5 // pred_region
      %s123 = ssub.s32 %s10, 1
      // Predicated region
      $region13: #{down_block_2d.2} parent=11 // pred_check
        %p124 = pneg %p57
      $region14: #{down_block_2d.2} parent=11 // pred_check_branch
        %126 = sbr.rel (%p124) target = $region16
      $region15: #{down_block_2d.2} parent=11 // pred_region
        _
      $region16: #{down_block_2d.2} parent=11 // pred_fallthru
        _
    $region12: #{down_block_2d.2} parent=5 // pred_fallthru
      _
    %p127 = scmp.lt.s32.totalorder %s10, 2
    // Predicated region
    $region17: #{down_block_2d.2} parent=5 // pred_check
      %p128 = pneg %p127
    $region18: #{down_block_2d.2} parent=5 // pred_check_branch
      %130 = sbr.rel (%p128) target = $region20
    $region19: #{down_block_2d.2} parent=5 // pred_region
      // Predicated region
      $region21: #{down_block_2d.2} parent=19 // pred_check
        %p131 = pneg %p30
      $region22: #{down_block_2d.2} parent=19 // pred_check_branch
        %133 = sbr.rel (%p131) target = $region24
      $region23: #{down_block_2d.2} parent=19 // pred_region
        %s134 = smul.u32 32, %s10
        %p135 = scmp.lt.s32.totalorder %s134, 63
        %s136 = scalar_select %p135, %s134, 63
        %s137 = smul.addr %s136, 4
        %s138 = scalar_lea.vmem %s0, %s137
        %s139 = smul.u32 32, %s10
      $region24: #{down_block_2d.2} parent=19 // pred_fallthru
        _
    $region20: #{down_block_2d.2} parent=5 // pred_fallthru
      _
    %p140 = scmp.le.s32.totalorder 1, %s10
    %p141 = scmp.lt.s32.totalorder %s10, 3
    %p142 = pnand %p140, %p141
    %p143 = pneg %p142
    // Predicated region
    $region25: #{down_block_2d.2} parent=5 // pred_check
      _
    $region26: #{down_block_2d.2} parent=5 // pred_check_branch
      %145 = sbr.rel (%p142) target = $region28
    $region27: #{down_block_2d.2} parent=5 // pred_region
      %s146 = ssub.s32 %s10, 1
      %s147 = smul.u32 32, %s15
      %p148 = scmp.lt.s32.totalorder %s147, 63
      %s149 = scalar_select %p148, %s147, 63
      %s150 = smul.addr %s149, 4
      %s151 = scalar_lea.vmem %s0, %s150
      %p152 = pneg %p36
      %p153 = pneg %p33
      %p154 = pneg %p57
      %p155 = pneg %p54
      %p156 = pneg %p83
      %p157 = pneg %p80
      %s158 = smul.u32 32, %s15
      %p159 = scmp.lt.s32.totalorder %s158, 63
      %s160 = scalar_select %p159, %s158, 63
      %s161 = smul.addr %s160, 4
      %s162 = scalar_lea.vmem %s2, %s161
      %p163 = pneg %p109
      %p164 = pneg %p106
      %p165 = scmp.lt.s32.totalorder %s15, 1
      %s166 = scalar_select %p165, %s15, 1
      %s167 = smul.addr %s166, 2
      %s168 = scalar_lea.vmem %s3, %s167
      %s169 = smul.u32 32, %s15
      %p170 = scmp.lt.s32.totalorder %s169, 63
      %s171 = scalar_select %p170, %s169, 63
      %s172 = smul.addr %s171, 4
      %s173 = scalar_lea.vmem %s0, %s172
      %s174 = smul.u32 32, %s15
      %s175 = smul.u32 32, %s15
      %p176 = scmp.lt.s32.totalorder %s175, 63
      %s177 = scalar_select %p176, %s175, 63
      %s178 = smul.addr %s177, 4
      %s179 = scalar_lea.vmem %s2, %s178
      %s180 = smul.u32 32, %s15
      %p181 = scmp.lt.s32.totalorder %s15, 1
      %s182 = scalar_select %p181, %s15, 1
      %s183 = smul.addr %s182, 2
      %s184 = scalar_lea.vmem %s3, %s183
      %v186 = vld [vmem:[%s173] sm:$0xf]
      %v187 = vld [vmem:[%s173 + $0x4] sm:$0xf]
      %v188 = vld [vmem:[%s173 + $0x8] sm:$0xf]
      %v189 = vld [vmem:[%s173 + $0xc] sm:$0xf]
      %v190 = vld [vmem:[%s173 + $0x10] sm:$0xf]
      %v191 = vld [vmem:[%s173 + $0x14] sm:$0xf]
      %v192 = vld [vmem:[%s173 + $0x18] sm:$0xf]
      %v193 = vld [vmem:[%s173 + $0x1c] sm:$0xf]
      %v194 = vld [vmem:[%s173 + $0x20] sm:$0xf]
      %v195 = vld [vmem:[%s173 + $0x24] sm:$0xf]
      %v196 = vld [vmem:[%s173 + $0x28] sm:$0xf]
      %v197 = vld [vmem:[%s173 + $0x2c] sm:$0xf]
      %v198 = vld [vmem:[%s173 + $0x30] sm:$0xf]
      %v199 = vld [vmem:[%s173 + $0x34] sm:$0xf]
      %v200 = vld [vmem:[%s173 + $0x38] sm:$0xf]
      %v201 = vld [vmem:[%s173 + $0x3c] sm:$0xf]
      %v202 = vld [vmem:[%s173 + $0x40] sm:$0xf]
      %v203 = vld [vmem:[%s173 + $0x44] sm:$0xf]
      %v204 = vld [vmem:[%s173 + $0x48] sm:$0xf]
      %v205 = vld [vmem:[%s173 + $0x4c] sm:$0xf]
      %v206 = vld [vmem:[%s173 + $0x50] sm:$0xf]
      %v207 = vld [vmem:[%s173 + $0x54] sm:$0xf]
      %v208 = vld [vmem:[%s173 + $0x58] sm:$0xf]
      %v209 = vld [vmem:[%s173 + $0x5c] sm:$0xf]
      %v210 = vld [vmem:[%s173 + $0x60] sm:$0xf]
      %v211 = vld [vmem:[%s173 + $0x64] sm:$0xf]
      %v212 = vld [vmem:[%s173 + $0x68] sm:$0xf]
      %v213 = vld [vmem:[%s173 + $0x6c] sm:$0xf]
      %v214 = vld [vmem:[%s173 + $0x70] sm:$0xf]
      %v215 = vld [vmem:[%s173 + $0x74] sm:$0xf]
      %v216 = vld [vmem:[%s173 + $0x78] sm:$0xf]
      %v217 = vld [vmem:[%s173 + $0x7c] sm:$0xf]
      %v218 = vld [vmem:[%s1] sm:$0xf]
      %v219 = vld [vmem:[%s1 + $0x4] sm:$0xf]
      %v220 = vld [vmem:[%s1 + $0x8] sm:$0xf]
      %v221 = vld [vmem:[%s1 + $0xc] sm:$0xf]
      %v222 = vld [vmem:[%s1 + $0x10] sm:$0x3]
      %v255 = vunpack.c.l.b16 %v186
      %v256 = vunpack.c.l.b16 %v187
      %v257 = vunpack.c.l.b16 %v188
      %v258 = vunpack.c.l.b16 %v189
      %v259 = vunpack.c.l.b16 %v190
      %v260 = vunpack.c.l.b16 %v191
      %v261 = vunpack.c.l.b16 %v192
      %v262 = vunpack.c.l.b16 %v193
      %v263 = vunpack.c.l.b16 %v194
      %v264 = vunpack.c.l.b16 %v195
      %v265 = vunpack.c.l.b16 %v196
      %v266 = vunpack.c.l.b16 %v197
      %v267 = vunpack.c.l.b16 %v198
      %v268 = vunpack.c.l.b16 %v199
      %v269 = vunpack.c.l.b16 %v200
      %v270 = vunpack.c.l.b16 %v201
      %v271 = vunpack.c.l.b16 %v202
      %v272 = vunpack.c.l.b16 %v203
      %v273 = vunpack.c.l.b16 %v204
      %v274 = vunpack.c.l.b16 %v205
      %v275 = vunpack.c.l.b16 %v206
      %v276 = vunpack.c.l.b16 %v207
      %v277 = vunpack.c.l.b16 %v208
      %v278 = vunpack.c.l.b16 %v209
      %v279 = vunpack.c.l.b16 %v210
      %v280 = vunpack.c.l.b16 %v211
      %v281 = vunpack.c.l.b16 %v212
      %v282 = vunpack.c.l.b16 %v213
      %v283 = vunpack.c.l.b16 %v214
      %v284 = vunpack.c.l.b16 %v215
      %v285 = vunpack.c.l.b16 %v216
      %v286 = vunpack.c.l.b16 %v217
      %v287 = vpack.c.b16 %v256, %v255
      %v288 = vpack.c.b16 %v258, %v257
      %v289 = vpack.c.b16 %v260, %v259
      %v290 = vpack.c.b16 %v262, %v261
      %v291 = vpack.c.b16 %v264, %v263
      %v292 = vpack.c.b16 %v266, %v265
      %v293 = vpack.c.b16 %v268, %v267
      %v294 = vpack.c.b16 %v270, %v269
      %v295 = vpack.c.b16 %v272, %v271
      %v296 = vpack.c.b16 %v274, %v273
      %v297 = vpack.c.b16 %v276, %v275
      %v298 = vpack.c.b16 %v278, %v277
      %v299 = vpack.c.b16 %v280, %v279
      %v300 = vpack.c.b16 %v282, %v281
      %v301 = vpack.c.b16 %v284, %v283
      %v302 = vpack.c.b16 %v286, %v285
      %v308 = vunpack.c.l.b16 %v218
      %v309 = vunpack.c.l.b16 %v219
      %v310 = vunpack.c.l.b16 %v220
      %v311 = vunpack.c.l.b16 %v221
      %v312 = vunpack.c.l.b16 %v222
      %v313 = vpack.c.b16 %v309, %v308
      %v314 = vpack.c.b16 %v311, %v310
      %v315 = vpack.c.b16 %v312, %v312
      %vm318 = vcmask 293888
      %v320 = vsel %vm318, %v287, 0
      %v323 = vsel %vm318, %v288, 0
      %v326 = vsel %vm318, %v289, 0
      %v329 = vsel %vm318, %v290, 0
      %v332 = vsel %vm318, %v291, 0
      %v335 = vsel %vm318, %v292, 0
      %v338 = vsel %vm318, %v293, 0
      %v341 = vsel %vm318, %v294, 0
      %v344 = vsel %vm318, %v295, 0
      %v347 = vsel %vm318, %v296, 0
      %v350 = vsel %vm318, %v297, 0
      %v353 = vsel %vm318, %v298, 0
      %v356 = vsel %vm318, %v299, 0
      %v359 = vsel %vm318, %v300, 0
      %v362 = vsel %vm318, %v301, 0
      %v365 = vsel %vm318, %v302, 0
      %vm367 = vcmask 1041408
      %v369 = vsel %vm367, %v315, 0
      %371 = vmatprep.subr.bf16.mxu0 0
      %372 = vmatpush1.bf16.msra.mxu0 0
      %373 = vmatprep.subr.bf16.mxu0 0
      %374 = vmatpush1.bf16.msra.mxu0 0
      %375 = vmatprep.subr.bf16.mxu0 0
      %376 = vmatpush1.bf16.msra.mxu0 0
      %377 = vmatprep.subr.bf16.mxu0 0
      %378 = vmatpush1.bf16.msra.mxu0 0
      %379 = vmatprep.subr.bf16.mxu0 0
      %380 = vmatpush1.bf16.msra.mxu0 0
      %381 = vmatprep.subr.bf16.mxu0 0
      %382 = vmatpush1.bf16.msra.mxu0 %v369
      %383 = vmatprep.subr.bf16.mxu0 0
      %384 = vmatpush1.bf16.msra.mxu0 %v314
      %385 = vmatprep.subr.bf16.mxu0 0
      %386 = vmatpush1.bf16.msra.mxu0 %v313
      %387 = vmatprep.subr.bf16.mxu0 0
      %388 = vmatpush2.bf16.msra.mxu0 0
      %389 = vmatprep.subr.bf16.mxu0 0
      %390 = vmatpush2.bf16.msra.mxu0 0
      %391 = vmatprep.subr.bf16.mxu0 0
      %392 = vmatpush2.bf16.msra.mxu0 0
      %393 = vmatprep.subr.bf16.mxu0 0
      %394 = vmatpush2.bf16.msra.mxu0 0
      %395 = vmatprep.subr.bf16.mxu0 0
      %396 = vmatpush2.bf16.msra.mxu0 0
      %397 = vmatprep.subr.bf16.mxu0 0
      %398 = vmatpush2.bf16.msra.mxu0 0
      %399 = vmatprep.subr.bf16.mxu0 0
      %400 = vmatpush2.bf16.msra.mxu0 0
      %401 = vmatprep.subr.bf16.mxu0 0
      %402 = vmatpush2.bf16.msra.mxu0 0
      %403 = vmatprep.mubr.bf16.mxu0 0
      %404 = vmatmul.mubr.bf16.gmra.mxu0 %v320
      %v405 = vpop.f32.mrf.mxu0
      %v406 = vadd.f32 0.0, %v405
      %v407 = vpop.f32.mrf.mxu0
      %v408 = vpop.f32.mrf.mxu0
      %v409 = vadd.f32 0.0, %v408
      %v410 = vpop.f32.mrf.mxu0
      %411 = vmatprep.mubr.bf16.mxu0 0
      %412 = vmatmul.mubr.bf16.gmra.mxu0 %v323
      %v413 = vpop.f32.mrf.mxu0
      %v414 = vadd.f32 0.0, %v413
      %v415 = vpop.f32.mrf.mxu0
      %v416 = vpop.f32.mrf.mxu0
      %v417 = vadd.f32 0.0, %v416
      %v418 = vpop.f32.mrf.mxu0
      %419 = vmatprep.mubr.bf16.mxu0 0
      %420 = vmatmul.mubr.bf16.gmra.mxu0 %v326
      %v421 = vpop.f32.mrf.mxu0
      %v422 = vadd.f32 0.0, %v421
      %v423 = vpop.f32.mrf.mxu0
      %v424 = vpop.f32.mrf.mxu0
      %v425 = vadd.f32 0.0, %v424
      %v426 = vpop.f32.mrf.mxu0
      %427 = vmatprep.mubr.bf16.mxu0 0
      %428 = vmatmul.mubr.bf16.gmra.mxu0 %v329
      %v429 = vpop.f32.mrf.mxu0
      %v430 = vadd.f32 0.0, %v429
      %v431 = vpop.f32.mrf.mxu0
      %v432 = vpop.f32.mrf.mxu0
      %v433 = vadd.f32 0.0, %v432
      %v434 = vpop.f32.mrf.mxu0
      %435 = vmatprep.mubr.bf16.mxu0 0
      %436 = vmatmul.mubr.bf16.gmra.mxu0 %v332
      %v437 = vpop.f32.mrf.mxu0
      %v438 = vadd.f32 0.0, %v437
      %v439 = vpop.f32.mrf.mxu0
      %v440 = vpop.f32.mrf.mxu0
      %v441 = vadd.f32 0.0, %v440
      %v442 = vpop.f32.mrf.mxu0
      %443 = vmatprep.mubr.bf16.mxu0 0
      %444 = vmatmul.mubr.bf16.gmra.mxu0 %v335
      %v445 = vpop.f32.mrf.mxu0
      %v446 = vadd.f32 0.0, %v445
      %v447 = vpop.f32.mrf.mxu0
      %v448 = vpop.f32.mrf.mxu0
      %v449 = vadd.f32 0.0, %v448
      %v450 = vpop.f32.mrf.mxu0
      %451 = vmatprep.mubr.bf16.mxu0 0
      %452 = vmatmul.mubr.bf16.gmra.mxu0 %v338
      %v453 = vpop.f32.mrf.mxu0
      %v454 = vadd.f32 0.0, %v453
      %v455 = vpop.f32.mrf.mxu0
      %v456 = vpop.f32.mrf.mxu0
      %v457 = vadd.f32 0.0, %v456
      %v458 = vpop.f32.mrf.mxu0
      %459 = vmatprep.mubr.bf16.mxu0 0
      %460 = vmatmul.mubr.bf16.gmra.mxu0 %v341
      %v461 = vpop.f32.mrf.mxu0
      %v462 = vadd.f32 0.0, %v461
      %v463 = vpop.f32.mrf.mxu0
      %v464 = vpop.f32.mrf.mxu0
      %v465 = vadd.f32 0.0, %v464
      %v466 = vpop.f32.mrf.mxu0
      %467 = vmatprep.mubr.bf16.mxu0 0
      %468 = vmatmul.mubr.bf16.gmra.mxu0 %v344
      %v469 = vpop.f32.mrf.mxu0
      %v470 = vadd.f32 0.0, %v469
      %v471 = vpop.f32.mrf.mxu0
      %v472 = vpop.f32.mrf.mxu0
      %v473 = vadd.f32 0.0, %v472
      %v474 = vpop.f32.mrf.mxu0
      %475 = vmatprep.mubr.bf16.mxu0 0
      %476 = vmatmul.mubr.bf16.gmra.mxu0 %v347
      %v477 = vpop.f32.mrf.mxu0
      %v478 = vadd.f32 0.0, %v477
      %v479 = vpop.f32.mrf.mxu0
      %v480 = vpop.f32.mrf.mxu0
      %v481 = vadd.f32 0.0, %v480
      %v482 = vpop.f32.mrf.mxu0
      %483 = vmatprep.mubr.bf16.mxu0 0
      %484 = vmatmul.mubr.bf16.gmra.mxu0 %v350
      %v485 = vpop.f32.mrf.mxu0
      %v486 = vadd.f32 0.0, %v485
      %v487 = vpop.f32.mrf.mxu0
      %v488 = vpop.f32.mrf.mxu0
      %v489 = vadd.f32 0.0, %v488
      %v490 = vpop.f32.mrf.mxu0
      %491 = vmatprep.mubr.bf16.mxu0 0
      %492 = vmatmul.mubr.bf16.gmra.mxu0 %v353
      %v493 = vpop.f32.mrf.mxu0
      %v494 = vadd.f32 0.0, %v493
      %v495 = vpop.f32.mrf.mxu0
      %v496 = vpop.f32.mrf.mxu0
      %v497 = vadd.f32 0.0, %v496
      %v498 = vpop.f32.mrf.mxu0
      %499 = vmatprep.mubr.bf16.mxu0 0
      %500 = vmatmul.mubr.bf16.gmra.mxu0 %v356
      %v501 = vpop.f32.mrf.mxu0
      %v502 = vadd.f32 0.0, %v501
      %v503 = vpop.f32.mrf.mxu0
      %v504 = vpop.f32.mrf.mxu0
      %v505 = vadd.f32 0.0, %v504
      %v506 = vpop.f32.mrf.mxu0
      %507 = vmatprep.mubr.bf16.mxu0 0
      %508 = vmatmul.mubr.bf16.gmra.mxu0 %v359
      %v509 = vpop.f32.mrf.mxu0
      %v510 = vadd.f32 0.0, %v509
      %v511 = vpop.f32.mrf.mxu0
      %v512 = vpop.f32.mrf.mxu0
      %v513 = vadd.f32 0.0, %v512
      %v514 = vpop.f32.mrf.mxu0
      %515 = vmatprep.mubr.bf16.mxu0 0
      %516 = vmatmul.mubr.bf16.gmra.mxu0 %v362
      %v517 = vpop.f32.mrf.mxu0
      %v518 = vadd.f32 0.0, %v517
      %v519 = vpop.f32.mrf.mxu0
      %v520 = vpop.f32.mrf.mxu0
      %v521 = vadd.f32 0.0, %v520
      %v522 = vpop.f32.mrf.mxu0
      %523 = vmatprep.mubr.bf16.mxu0 0
      %524 = vmatmul.mubr.bf16.gmra.mxu0 %v365
      %v525 = vpop.f32.mrf.mxu0
      %v526 = vadd.f32 0.0, %v525
      %v527 = vpop.f32.mrf.mxu0
      %v528 = vpop.f32.mrf.mxu0
      %v529 = vadd.f32 0.0, %v528
      %v530 = vpop.f32.mrf.mxu0
      %531 = vdwg.mxu0
      %v532 = vpack.c.bf16 %v409, %v406
      %v533 = vpack.c.bf16 %v417, %v414
      %v534 = vpack.c.bf16 %v425, %v422
      %v535 = vpack.c.bf16 %v433, %v430
      %v536 = vpack.c.bf16 %v441, %v438
      %v537 = vpack.c.bf16 %v449, %v446
      %v538 = vpack.c.bf16 %v457, %v454
      %v539 = vpack.c.bf16 %v465, %v462
      %v540 = vpack.c.bf16 %v473, %v470
      %v541 = vpack.c.bf16 %v481, %v478
      %v542 = vpack.c.bf16 %v489, %v486
      %v543 = vpack.c.bf16 %v497, %v494
      %v544 = vpack.c.bf16 %v505, %v502
      %v545 = vpack.c.bf16 %v513, %v510
      %v546 = vpack.c.bf16 %v521, %v518
      %v547 = vpack.c.bf16 %v529, %v526
      %v564 = vunpack.c.l.b16 %v532
      %v565 = vunpack.c.h.b16 %v532
      %v566 = vunpack.c.l.b16 %v533
      %v567 = vunpack.c.h.b16 %v533
      %v568 = vunpack.c.l.b16 %v534
      %v569 = vunpack.c.h.b16 %v534
      %v570 = vunpack.c.l.b16 %v535
      %v571 = vunpack.c.h.b16 %v535
      %v572 = vunpack.c.l.b16 %v536
      %v573 = vunpack.c.h.b16 %v536
      %v574 = vunpack.c.l.b16 %v537
      %v575 = vunpack.c.h.b16 %v537
      %v576 = vunpack.c.l.b16 %v538
      %v577 = vunpack.c.h.b16 %v538
      %v578 = vunpack.c.l.b16 %v539
      %v579 = vunpack.c.h.b16 %v539
      %v580 = vunpack.c.l.b16 %v540
      %v581 = vunpack.c.h.b16 %v540
      %v582 = vunpack.c.l.b16 %v541
      %v583 = vunpack.c.h.b16 %v541
      %v584 = vunpack.c.l.b16 %v542
      %v585 = vunpack.c.h.b16 %v542
      %v586 = vunpack.c.l.b16 %v543
      %v587 = vunpack.c.h.b16 %v543
      %v588 = vunpack.c.l.b16 %v544
      %v589 = vunpack.c.h.b16 %v544
      %v590 = vunpack.c.l.b16 %v545
      %v591 = vunpack.c.h.b16 %v545
      %v592 = vunpack.c.l.b16 %v546
      %v593 = vunpack.c.h.b16 %v546
      %v594 = vunpack.c.l.b16 %v547
      %v595 = vunpack.c.h.b16 %v547
      %v596 = vpack.c.b16 %v564, %v564
      %v597 = vpack.c.b16 %v565, %v565
      %v598 = vpack.c.b16 %v566, %v566
      %v599 = vpack.c.b16 %v567, %v567
      %v600 = vpack.c.b16 %v568, %v568
      %v601 = vpack.c.b16 %v569, %v569
      %v602 = vpack.c.b16 %v570, %v570
      %v603 = vpack.c.b16 %v571, %v571
      %v604 = vpack.c.b16 %v572, %v572
      %v605 = vpack.c.b16 %v573, %v573
      %v606 = vpack.c.b16 %v574, %v574
      %v607 = vpack.c.b16 %v575, %v575
      %v608 = vpack.c.b16 %v576, %v576
      %v609 = vpack.c.b16 %v577, %v577
      %v610 = vpack.c.b16 %v578, %v578
      %v611 = vpack.c.b16 %v579, %v579
      %v612 = vpack.c.b16 %v580, %v580
      %v613 = vpack.c.b16 %v581, %v581
      %v614 = vpack.c.b16 %v582, %v582
      %v615 = vpack.c.b16 %v583, %v583
      %v616 = vpack.c.b16 %v584, %v584
      %v617 = vpack.c.b16 %v585, %v585
      %v618 = vpack.c.b16 %v586, %v586
      %v619 = vpack.c.b16 %v587, %v587
      %v620 = vpack.c.b16 %v588, %v588
      %v621 = vpack.c.b16 %v589, %v589
      %v622 = vpack.c.b16 %v590, %v590
      %v623 = vpack.c.b16 %v591, %v591
      %v624 = vpack.c.b16 %v592, %v592
      %v625 = vpack.c.b16 %v593, %v593
      %v626 = vpack.c.b16 %v594, %v594
      %v627 = vpack.c.b16 %v595, %v595
      %660 = vst [vmem:[%s179] sm:$0xf] %v596
      %661 = vst [vmem:[%s179 + $0x4] sm:$0xf] %v597
      %662 = vst [vmem:[%s179 + $0x8] sm:$0xf] %v598
      %663 = vst [vmem:[%s179 + $0xc] sm:$0xf] %v599
      %664 = vst [vmem:[%s179 + $0x10] sm:$0xf] %v600
      %665 = vst [vmem:[%s179 + $0x14] sm:$0xf] %v601
      %666 = vst [vmem:[%s179 + $0x18] sm:$0xf] %v602
      %667 = vst [vmem:[%s179 + $0x1c] sm:$0xf] %v603
      %668 = vst [vmem:[%s179 + $0x20] sm:$0xf] %v604
      %669 = vst [vmem:[%s179 + $0x24] sm:$0xf] %v605
      %670 = vst [vmem:[%s179 + $0x28] sm:$0xf] %v606
      %671 = vst [vmem:[%s179 + $0x2c] sm:$0xf] %v607
      %672 = vst [vmem:[%s179 + $0x30] sm:$0xf] %v608
      %673 = vst [vmem:[%s179 + $0x34] sm:$0xf] %v609
      %674 = vst [vmem:[%s179 + $0x38] sm:$0xf] %v610
      %675 = vst [vmem:[%s179 + $0x3c] sm:$0xf] %v611
      %676 = vst [vmem:[%s179 + $0x40] sm:$0xf] %v612
      %677 = vst [vmem:[%s179 + $0x44] sm:$0xf] %v613
      %678 = vst [vmem:[%s179 + $0x48] sm:$0xf] %v614
      %679 = vst [vmem:[%s179 + $0x4c] sm:$0xf] %v615
      %680 = vst [vmem:[%s179 + $0x50] sm:$0xf] %v616
      %681 = vst [vmem:[%s179 + $0x54] sm:$0xf] %v617
      %682 = vst [vmem:[%s179 + $0x58] sm:$0xf] %v618
      %683 = vst [vmem:[%s179 + $0x5c] sm:$0xf] %v619
      %684 = vst [vmem:[%s179 + $0x60] sm:$0xf] %v620
      %685 = vst [vmem:[%s179 + $0x64] sm:$0xf] %v621
      %686 = vst [vmem:[%s179 + $0x68] sm:$0xf] %v622
      %687 = vst [vmem:[%s179 + $0x6c] sm:$0xf] %v623
      %688 = vst [vmem:[%s179 + $0x70] sm:$0xf] %v624
      %689 = vst [vmem:[%s179 + $0x74] sm:$0xf] %v625
      %690 = vst [vmem:[%s179 + $0x78] sm:$0xf] %v626
      %691 = vst [vmem:[%s179 + $0x7c] sm:$0xf] %v627
      %v692 = vadd.f32 %v406, %v409
      %v693 = vadd.f32 %v692, %v414
      %v694 = vadd.f32 %v693, %v417
      %v695 = vadd.f32 %v694, %v422
      %v696 = vadd.f32 %v695, %v425
      %v697 = vadd.f32 %v696, %v430
      %v698 = vadd.f32 %v697, %v433
      %v699 = vadd.f32 %v698, %v438
      %v700 = vadd.f32 %v699, %v441
      %v701 = vadd.f32 %v700, %v446
      %v702 = vadd.f32 %v701, %v449
      %v703 = vadd.f32 %v702, %v454
      %v704 = vadd.f32 %v703, %v457
      %v705 = vadd.f32 %v704, %v462
      %v706 = vadd.f32 %v705, %v465
      %v707 = vadd.f32 %v706, %v470
      %v708 = vadd.f32 %v707, %v473
      %v709 = vadd.f32 %v708, %v478
      %v710 = vadd.f32 %v709, %v481
      %v711 = vadd.f32 %v710, %v486
      %v712 = vadd.f32 %v711, %v489
      %v713 = vadd.f32 %v712, %v494
      %v714 = vadd.f32 %v713, %v497
      %v715 = vadd.f32 %v714, %v502
      %v716 = vadd.f32 %v715, %v505
      %v717 = vadd.f32 %v716, %v510
      %v718 = vadd.f32 %v717, %v513
      %v719 = vadd.f32 %v718, %v518
      %v720 = vadd.f32 %v719, %v521
      %v721 = vadd.f32 %v720, %v526
      %v722 = vadd.f32 %v721, %v529
      %v723 = vrot.slane %v722, 4
      %v724 = vadd.f32 %v722, %v723
      %v725 = vrot.slane %v724, 2
      %v726 = vadd.f32 %v724, %v725
      %v727 = vrot.slane %v726, 1
      %v728 = vadd.f32 %v726, %v727
      %729 = vst [vmem:[%s184] sm:$0x1] %v728
      %v730 = vmul.f32 %v406, %v406
      %v731 = vmul.f32 %v409, %v409
      %v732 = vmul.f32 %v414, %v414
      %v733 = vmul.f32 %v417, %v417
      %v734 = vmul.f32 %v422, %v422
      %v735 = vmul.f32 %v425, %v425
      %v736 = vmul.f32 %v430, %v430
      %v737 = vmul.f32 %v433, %v433
      %v738 = vmul.f32 %v438, %v438
      %v739 = vmul.f32 %v441, %v441
      %v740 = vmul.f32 %v446, %v446
      %v741 = vmul.f32 %v449, %v449
      %v742 = vmul.f32 %v454, %v454
      %v743 = vmul.f32 %v457, %v457
      %v744 = vmul.f32 %v462, %v462
      %v745 = vmul.f32 %v465, %v465
      %v746 = vmul.f32 %v470, %v470
      %v747 = vmul.f32 %v473, %v473
      %v748 = vmul.f32 %v478, %v478
      %v749 = vmul.f32 %v481, %v481
      %v750 = vmul.f32 %v486, %v486
      %v751 = vmul.f32 %v489, %v489
      %v752 = vmul.f32 %v494, %v494
      %v753 = vmul.f32 %v497, %v497
      %v754 = vmul.f32 %v502, %v502
      %v755 = vmul.f32 %v505, %v505
      %v756 = vmul.f32 %v510, %v510
      %v757 = vmul.f32 %v513, %v513
      %v758 = vmul.f32 %v518, %v518
      %v759 = vmul.f32 %v521, %v521
      %v760 = vmul.f32 %v526, %v526
      %v761 = vmul.f32 %v529, %v529
      %v762 = vadd.f32 %v730, %v731
      %v763 = vadd.f32 %v762, %v732
      %v764 = vadd.f32 %v763, %v733
      %v765 = vadd.f32 %v764, %v734
      %v766 = vadd.f32 %v765, %v735
      %v767 = vadd.f32 %v766, %v736
      %v768 = vadd.f32 %v767, %v737
      %v769 = vadd.f32 %v768, %v738
      %v770 = vadd.f32 %v769, %v739
      %v771 = vadd.f32 %v770, %v740
      %v772 = vadd.f32 %v771, %v741
      %v773 = vadd.f32 %v772, %v742
      %v774 = vadd.f32 %v773, %v743
      %v775 = vadd.f32 %v774, %v744
      %v776 = vadd.f32 %v775, %v745
      %v777 = vadd.f32 %v776, %v746
      %v778 = vadd.f32 %v777, %v747
      %v779 = vadd.f32 %v778, %v748
      %v780 = vadd.f32 %v779, %v749
      %v781 = vadd.f32 %v780, %v750
      %v782 = vadd.f32 %v781, %v751
      %v783 = vadd.f32 %v782, %v752
      %v784 = vadd.f32 %v783, %v753
      %v785 = vadd.f32 %v784, %v754
      %v786 = vadd.f32 %v785, %v755
      %v787 = vadd.f32 %v786, %v756
      %v788 = vadd.f32 %v787, %v757
      %v789 = vadd.f32 %v788, %v758
      %v790 = vadd.f32 %v789, %v759
      %v791 = vadd.f32 %v790, %v760
      %v792 = vadd.f32 %v791, %v761
      %v793 = vrot.slane %v792, 4
      %v794 = vadd.f32 %v792, %v793
      %v795 = vrot.slane %v794, 2
      %v796 = vadd.f32 %v794, %v795
      %v797 = vrot.slane %v796, 1
      %v798 = vadd.f32 %v796, %v797
      %799 = vst [vmem:[%s184 + $0x1] sm:$0x1] %v798
      %s800 = smul.u32 32, %s15
      %p801 = scmp.lt.s32.totalorder %s800, 63
      %s802 = scalar_select %p801, %s800, 63
      %s803 = smul.addr %s802, 4
      %s804 = scalar_lea.vmem %s2, %s803
      %p805 = scmp.lt.s32.totalorder %s15, 1
      %s806 = scalar_select %p805, %s15, 1
      %s807 = smul.addr %s806, 2
      %s808 = scalar_lea.vmem %s3, %s807
      // Predicated region
      $region29: #{down_block_2d.2} parent=27 // pred_check
        %p809 = pneg %p80
      $region30: #{down_block_2d.2} parent=27 // pred_check_branch
        %811 = sbr.rel (%p809) target = $region32
      $region31: #{down_block_2d.2} parent=27 // pred_region
        %s812 = smul.u32 32, %s15
      $region32: #{down_block_2d.2} parent=27 // pred_fallthru
        _
      // Predicated region
      $region33: #{down_block_2d.2} parent=27 // pred_check
        %p813 = pneg %p106
      $region34: #{down_block_2d.2} parent=27 // pred_check_branch
        %815 = sbr.rel (%p813) target = $region36
      $region35: #{down_block_2d.2} parent=27 // pred_region
        _
      $region36: #{down_block_2d.2} parent=27 // pred_fallthru
        _
    $region28: #{down_block_2d.2} parent=5 // pred_fallthru
      _
    %p816 = scmp.le.s32.totalorder 2, %s10
    // Predicated region
    $region37: #{down_block_2d.2} parent=5 // pred_check
      %p817 = pneg %p816
    $region38: #{down_block_2d.2} parent=5 // pred_check_branch
      %819 = sbr.rel (%p817) target = $region40
    $region39: #{down_block_2d.2} parent=5 // pred_region
      %s820 = ssub.s32 %s10, 2
      // Predicated region
      $region41: #{down_block_2d.2} parent=39 // pred_check
        %p821 = pneg %p86
      $region42: #{down_block_2d.2} parent=39 // pred_check_branch
        %823 = sbr.rel (%p821) target = $region44
      $region43: #{down_block_2d.2} parent=39 // pred_region
        %s824 = smul.u32 32, %s16
        %p825 = scmp.lt.s32.totalorder %s824, 63
        %s826 = scalar_select %p825, %s824, 63
        %s827 = smul.addr %s826, 4
        %s828 = scalar_lea.vmem %s2, %s827
      $region44: #{down_block_2d.2} parent=39 // pred_fallthru
        _
      // Predicated region
      $region45: #{down_block_2d.2} parent=39 // pred_check
        %p829 = pneg %p112
      $region46: #{down_block_2d.2} parent=39 // pred_check_branch
        %831 = sbr.rel (%p829) target = $region48
      $region47: #{down_block_2d.2} parent=39 // pred_region
        %p832 = scmp.lt.s32.totalorder %s16, 1
        %s833 = scalar_select %p832, %s16, 1
        %s834 = smul.addr %s833, 2
        %s835 = scalar_lea.vmem %s3, %s834
      $region48: #{down_block_2d.2} parent=39 // pred_fallthru
        _
    $region40: #{down_block_2d.2} parent=5 // pred_fallthru
      _
  $region6: #{down_block_2d.2} parent=0 // loop_footer
    %s14 = sadd.s32 1, %s10
  $region7: #{down_block_2d.2} parent=0 // loop_footer_branch
    %9 = sbr.rel target = $region3
  $region8: #{down_block_2d.2} parent=0 // loop_exit
    _

</llo_original>
